<compile_context>
chip_gen: v5e
topology: v5e:2x2
jax: 0.10.0
libtpu: 0.0.40
codegen_flags: <defaults>
</compile_context>

<pallas_src>
import functools
import math

import numpy as np
import jax
import jax.numpy as jnp
from jax.experimental import pallas as pl
from jax.experimental.pallas import tpu as pltpu

# Make the pure-JAX reference and the in-kernel MXU dots use the same (full f32)
# matmul precision so the correctness check is tight and deterministic.
jax.config.update("jax_default_matmul_precision", "highest")


# ---------------------------------------------------------------------------
# Sinusoidal positional-encoding table (same formula as the PyTorch module).
# ---------------------------------------------------------------------------
def get_sinusoid_encoding_table(t_seq, d_model):
    pos = np.arange(t_seq, dtype=np.float64)[:, None]
    i = np.arange(d_model, dtype=np.float64)[None, :]
    angle = pos / np.power(10000.0, 2.0 * np.floor(i / 2.0) / d_model)
    table = np.zeros((t_seq, d_model), dtype=np.float64)
    table[:, 0::2] = np.sin(angle[:, 0::2])
    table[:, 1::2] = np.cos(angle[:, 1::2])
    return jnp.asarray(table, dtype=jnp.float32)


# ---------------------------------------------------------------------------
# Kernel 1: token-embedding gather + positional-encoding add (dropout=identity)
# ---------------------------------------------------------------------------
def _embed_pos_kernel(ids_ref, emb_ref, pos_ref, out_ref):
    del ids_ref  # only consumed by the index_maps (scalar prefetch)
    out_ref[...] = emb_ref[...] + pos_ref[...]


def embed_and_position(token_ids, embed_mtrx, pos_table):
    """x = embedding[token_ids] + pos_table[:S]."""
    B, S = token_ids.shape
    V, D = embed_mtrx.shape
    N = B * S
    ids = token_ids.reshape(N).astype(jnp.int32)
    emb3 = embed_mtrx.reshape(V, 1, D)       # gather axis leading -> untiled
    pos3 = pos_table[:S].reshape(S, 1, D)

    out = pl.pallas_call(
        _embed_pos_kernel,
        out_shape=jax.ShapeDtypeStruct((N, 1, D), jnp.float32),
        grid_spec=pltpu.PrefetchScalarGridSpec(
            num_scalar_prefetch=1,
            grid=(N,),
            in_specs=[
                # data-dependent embedding row (scalar-prefetch gather)
                pl.BlockSpec((1, 1, D), lambda i, ids: (ids[i], 0, 0)),
                # positional-encoding row for position i % S
                pl.BlockSpec((1, 1, D), lambda i, ids: (i % S, 0, 0)),
            ],
            out_specs=pl.BlockSpec((1, 1, D), lambda i, ids: (i, 0, 0)),
        ),
        compiler_params=pltpu.CompilerParams(
            dimension_semantics=("arbitrary",)),
    )(ids, emb3, pos3)
    return out.reshape(B, S, D)


# ---------------------------------------------------------------------------
# Kernel 2: one fused TransformerEncoderLayer per grid step (grid over batch)
# ---------------------------------------------------------------------------
def _layernorm(x, gamma, beta, eps):
    mu = jnp.mean(x, axis=-1, keepdims=True)
    xc = x - mu
    var = jnp.mean(xc * xc, axis=-1, keepdims=True)
    return xc * jax.lax.rsqrt(var + eps) * gamma + beta


def _encoder_layer_kernel(src_ref, mask_ref,
                          wq_ref, bq_ref, wk_ref, bk_ref, wv_ref, bv_ref,
                          wo_ref, bo_ref, g1_ref, be1_ref,
                          w1_ref, c1_ref, w2_ref, c2_ref, g2_ref, be2_ref,
                          out_ref, *, n_heads, d_k, d_v, eps):
    x = src_ref[0].astype(jnp.float32)          # (S, D)
    key_mask = mask_ref[0]                      # (1, S): 1.0 keep, 0.0 pad
    S, D = x.shape

    # ---- multi-head self-attention --------------------------------------
    q = jnp.dot(x, wq_ref[...], preferred_element_type=jnp.float32) + bq_ref[...]
    k = jnp.dot(x, wk_ref[...], preferred_element_type=jnp.float32) + bk_ref[...]
    v = jnp.dot(x, wv_ref[...], preferred_element_type=jnp.float32) + bv_ref[...]

    inv_scale = jnp.float32(1.0 / math.sqrt(d_k))
    acc = jnp.zeros((S, D), jnp.float32)
    for h in range(n_heads):                    # static unroll over heads
        qh = q[:, h * d_k:(h + 1) * d_k]        # (S, d_k)
        kh = k[:, h * d_k:(h + 1) * d_k]
        vh = v[:, h * d_v:(h + 1) * d_v]
        # Q @ K^T without an explicit transpose (NT matmul on the MXU).
        sim = jax.lax.dot_general(
            qh, kh, (((1,), (1,)), ((), ())),
            preferred_element_type=jnp.float32) * inv_scale        # (S, S)
        sim = jnp.where(key_mask == 0.0, jnp.float32(-1e10), sim)
        sim = sim - jnp.max(sim, axis=-1, keepdims=True)
        p = jnp.exp(sim)
        p = p / jnp.sum(p, axis=-1, keepdims=True)
        ctx = jnp.dot(p, vh, preferred_element_type=jnp.float32)   # (S, d_v)
        # Fold this head's slice of the output projection into the accumulator
        # (equivalent to concat(heads) @ W_o, with no concat needed).
        acc = acc + jnp.dot(ctx, wo_ref[h * d_v:(h + 1) * d_v, :],
                            preferred_element_type=jnp.float32)
    attn_out = acc + bo_ref[...]

    # ---- residual + LayerNorm 1 (dropout = identity) ---------------------
    h1 = _layernorm(x + attn_out, g1_ref[...], be1_ref[...], eps)

    # ---- position-wise feed-forward --------------------------------------
    f = jnp.dot(h1, w1_ref[...], preferred_element_type=jnp.float32) + c1_ref[...]
    f = jnp.maximum(f, jnp.float32(0.0))        # ReLU
    f = jnp.dot(f, w2_ref[...], preferred_element_type=jnp.float32) + c2_ref[...]

    # ---- residual + LayerNorm 2 -------------------------------------------
    out = _layernorm(h1 + f, g2_ref[...], be2_ref[...], eps)
    out_ref[0] = out.astype(out_ref.dtype)


def encoder_layer(x, key_mask, p, *, n_heads, d_k, d_v, eps=1e-5):
    B, S, D = x.shape
    d_ff = p["w_ff1"].shape[1]

    def rep(shape):                      # weight blocks: full array, resident
        n = len(shape)
        return pl.BlockSpec(shape, lambda b, _n=n: (0,) * _n)

    kernel = functools.partial(_encoder_layer_kernel,
                               n_heads=n_heads, d_k=d_k, d_v=d_v, eps=eps)

    in_specs = [
        pl.BlockSpec((1, S, D), lambda b: (b, 0, 0)),        # activations
        pl.BlockSpec((1, 1, S), lambda b: (b, 0, 0)),        # key mask
        rep((D, n_heads * d_k)), rep((1, n_heads * d_k)),    # w_q, b_q
        rep((D, n_heads * d_k)), rep((1, n_heads * d_k)),    # w_k, b_k
        rep((D, n_heads * d_v)), rep((1, n_heads * d_v)),    # w_v, b_v
        rep((n_heads * d_v, D)), rep((1, D)),                # w_o, b_o
        rep((1, D)), rep((1, D)),                            # ln1 gamma, beta
        rep((D, d_ff)), rep((1, d_ff)),                      # w_ff1, b_ff1
        rep((d_ff, D)), rep((1, D)),                         # w_ff2, b_ff2
        rep((1, D)), rep((1, D)),                            # ln2 gamma, beta
    ]
    return pl.pallas_call(
        kernel,
        out_shape=jax.ShapeDtypeStruct((B, S, D), jnp.float32),
        grid_spec=pltpu.PrefetchScalarGridSpec(
            num_scalar_prefetch=0,
            grid=(B,),
            in_specs=in_specs,
            out_specs=pl.BlockSpec((1, S, D), lambda b: (b, 0, 0)),
        ),
        compiler_params=pltpu.CompilerParams(
            dimension_semantics=("parallel",)),   # v7x megacore split over batch
    )(x, key_mask,
      p["w_q"], p["b_q"], p["w_k"], p["b_k"], p["w_v"], p["b_v"],
      p["w_o"], p["b_o"], p["ln1_g"], p["ln1_b"],
      p["w_ff1"], p["b_ff1"], p["w_ff2"], p["b_ff2"], p["ln2_g"], p["ln2_b"])


def transformer_encoder(token_ids, src_mask, embed_mtrx, pos_table, layers,
                        *, n_heads, d_k, d_v):
    B, S = token_ids.shape
    x = embed_and_position(token_ids, embed_mtrx, pos_table)
    key_mask = src_mask.astype(jnp.float32).reshape(B, 1, S)
    for p in layers:
        x = encoder_layer(x, key_mask, p, n_heads=n_heads, d_k=d_k, d_v=d_v)
    return x


# ---------------------------------------------------------------------------
# Pure-JAX reference (reproduces the PyTorch forward, eval mode).
# ---------------------------------------------------------------------------
def _reference_encoder(token_ids, src_mask, embed_mtrx, pos_table, layers,
                       *, n_heads, d_k, d_v, eps=1e-5):
    B, S = token_ids.shape
    x = embed_mtrx[token_ids] + pos_table[:S][None]
    mask4 = src_mask[:, None, None, :]
    inv_scale = 1.0 / math.sqrt(d_k)

    def ln(y, g, b):
        mu = jnp.mean(y, -1, keepdims=True)
        var = jnp.mean((y - mu) ** 2, -1, keepdims=True)
        return (y - mu) / jnp.sqrt(var + eps) * g + b

    for p in layers:
        q = x @ p["w_q"] + p["b_q"]
        k = x @ p["w_k"] + p["b_k"]
        v = x @ p["w_v"] + p["b_v"]
        q = q.reshape(B, S, n_heads, d_k).transpose(0, 2, 1, 3)
        k = k.reshape(B, S, n_heads, d_k).transpose(0, 2, 1, 3)
        v = v.reshape(B, S, n_heads, d_v).transpose(0, 2, 1, 3)
        sim = jnp.einsum("bhqd,bhkd->bhqk", q, k) * inv_scale
        sim = jnp.where(mask4 == 0, -1e10, sim)
        attn = jax.nn.softmax(sim, axis=-1)
        ctx = jnp.einsum("bhqk,bhkd->bhqd", attn, v)
        ctx = ctx.transpose(0, 2, 1, 3).reshape(B, S, n_heads * d_v)
        a = ctx @ p["w_o"] + p["b_o"]
        h1 = ln(x + a, p["ln1_g"], p["ln1_b"])
        f = jax.nn.relu(h1 @ p["w_ff1"] + p["b_ff1"]) @ p["w_ff2"] + p["b_ff2"]
        x = ln(h1 + f, p["ln2_g"], p["ln2_b"])
    return x


# ---------------------------------------------------------------------------
# Deterministic parameter init (weights stored as (in, out) == PyTorch W^T).
# ---------------------------------------------------------------------------
def init_params(key, *, vocab, d_model, n_heads, d_k, d_v, d_ff, n_layers):
    k_embed, k_layers = jax.random.split(key)
    embed = jax.random.normal(k_embed, (vocab, d_model), jnp.float32)

    def linear(k, fan_in, fan_out):
        kw, kb = jax.random.split(k)
        w = jax.random.normal(kw, (fan_in, fan_out), jnp.float32) / math.sqrt(fan_in)
        b = 0.1 * jax.random.normal(kb, (1, fan_out), jnp.float32)
        return w, b

    layers = []
    for lk in jax.random.split(k_layers, n_layers):
        ks = jax.random.split(lk, 10)
        w_q, b_q = linear(ks[0], d_model, n_heads * d_k)
        w_k, b_k = linear(ks[1], d_model, n_heads * d_k)
        w_v, b_v = linear(ks[2], d_model, n_heads * d_v)
        w_o, b_o = linear(ks[3], n_heads * d_v, d_model)
        w_ff1, b_ff1 = linear(ks[4], d_model, d_ff)
        w_ff2, b_ff2 = linear(ks[5], d_ff, d_model)
        layers.append(dict(
            w_q=w_q, b_q=b_q, w_k=w_k, b_k=b_k, w_v=w_v, b_v=b_v,
            w_o=w_o, b_o=b_o,
            ln1_g=1.0 + 0.1 * jax.random.normal(ks[6], (1, d_model), jnp.float32),
            ln1_b=0.1 * jax.random.normal(ks[7], (1, d_model), jnp.float32),
            w_ff1=w_ff1, b_ff1=b_ff1, w_ff2=w_ff2, b_ff2=b_ff2,
            ln2_g=1.0 + 0.1 * jax.random.normal(ks[8], (1, d_model), jnp.float32),
            ln2_b=0.1 * jax.random.normal(ks[9], (1, d_model), jnp.float32)))
    return embed, layers


if __name__ == "__main__":
    B, S = 2, 8
    VOCAB, D_MODEL, N_HEADS, D_K, D_V, D_FF, N_LAYERS, MAX_LEN = 50, 32, 4, 8, 8, 64, 2, 16

    key = jax.random.PRNGKey(0)
    k_params, k_tok = jax.random.split(key)
    embed_mtrx, layers = init_params(k_params, vocab=VOCAB, d_model=D_MODEL,
                                     n_heads=N_HEADS, d_k=D_K, d_v=D_V,
                                     d_ff=D_FF, n_layers=N_LAYERS)
    pos_table = get_sinusoid_encoding_table(MAX_LEN, D_MODEL)

    token_ids = jax.random.randint(k_tok, (B, S), 0, VOCAB, dtype=jnp.int32)
    # src_mask: 1 = real token, 0 = padding (masked out of attention keys)
    src_mask = jnp.ones((B, S), jnp.float32)
    src_mask = src_mask.at[0, 6:].set(0.0).at[1, 5:].set(0.0)

    out = transformer_encoder(token_ids, src_mask, embed_mtrx, pos_table, layers,
                              n_heads=N_HEADS, d_k=D_K, d_v=D_V)
    out = jax.block_until_ready(out)

    ref = _reference_encoder(token_ids, src_mask, embed_mtrx, pos_table, layers,
                             n_heads=N_HEADS, d_k=D_K, d_v=D_V)
    assert out.shape == (B, S, D_MODEL)
    max_err = float(jnp.max(jnp.abs(out - ref)))
    assert bool(jnp.allclose(out, ref, rtol=1e-2, atol=1e-2)), max_err

    print("KERNEL_OK")
</pallas_src>

<mosaic_0001>
module attributes {stable_mosaic.version = 11 : i64} {
  func.func @_embed_pos_kernel(%arg0: i32, %arg1: memref<16xi32, #tpu.memory_space<smem>>, %arg2: memref<1x1x32xf32, #tpu.memory_space<vmem>>, %arg3: memref<1x1x32xf32, #tpu.memory_space<vmem>>, %arg4: memref<1x1x32xf32, #tpu.memory_space<vmem>>) attributes {dimension_semantics = [#tpu.dimension_semantics<arbitrary>], iteration_bounds = array<i64: 16>, scalar_prefetch = 1 : i64, scratch_operands = 0 : i64, tpu.core_type = #tpu.core_type<tc>, window_params = [{transform_indices = @transform_0, window_bounds = array<i64: 1, 1, 32>}, {transform_indices = @transform_1, window_bounds = array<i64: 1, 1, 32>}, {transform_indices = @transform_2, window_bounds = array<i64: 1, 1, 32>}]} {
    %c0 = arith.constant 0 : index
    %c0_0 = arith.constant 0 : index
    %c0_1 = arith.constant 0 : index
    %0 = vector.load %arg2[%c0, %c0_0, %c0_1] : memref<1x1x32xf32, #tpu.memory_space<vmem>>, vector<1x1x32xf32>
    %c0_2 = arith.constant 0 : index
    %c0_3 = arith.constant 0 : index
    %c0_4 = arith.constant 0 : index
    %1 = vector.load %arg3[%c0_2, %c0_3, %c0_4] : memref<1x1x32xf32, #tpu.memory_space<vmem>>, vector<1x1x32xf32>
    %2 = arith.addf %0, %1 : vector<1x1x32xf32>
    %c0_5 = arith.constant 0 : index
    %c0_6 = arith.constant 0 : index
    %c0_7 = arith.constant 0 : index
    %3 = vector.load %arg4[%c0_5, %c0_6, %c0_7] : memref<1x1x32xf32, #tpu.memory_space<vmem>>, vector<1x1x32xf32>
    tpu.vector_store %arg4[%c0_5, %c0_6, %c0_7], %2 {strides = array<i32>} : memref<1x1x32xf32, #tpu.memory_space<vmem>>, vector<1x1x32xf32>,
    return
  }
  func.func @transform_0(%arg0: i32, %arg1: memref<16xi32, #tpu.memory_space<smem>>) -> (i32, i32, i32) {
    %0 = arith.index_cast %arg0 : i32 to index
    %1 = memref.load %arg1[%0] : memref<16xi32, #tpu.memory_space<smem>>
    %c0_i32 = arith.constant 0 : i32
    %c0_i32_0 = arith.constant 0 : i32
    %c0_i32_1 = arith.constant 0 : i32
    return %1, %c0_i32, %c0_i32_0 : i32, i32, i32
  }
  func.func @transform_1(%arg0: i32, %arg1: memref<16xi32, #tpu.memory_space<smem>>) -> (i32, i32, i32) {
    %c8_i32 = arith.constant 8 : i32
    %c0_i32 = arith.constant 0 : i32
    %0 = arith.cmpi eq, %c8_i32, %c0_i32 : i32
    %c1_i32 = arith.constant 1 : i32
    %1 = arith.select %0, %c1_i32, %c8_i32 : i32
    %2 = arith.remsi %arg0, %1 : i32
    %c0_i32_0 = arith.constant 0 : i32
    %3 = arith.cmpi ne, %2, %c0_i32_0 : i32
    %c0_i32_1 = arith.constant 0 : i32
    %4 = arith.cmpi slt, %2, %c0_i32_1 : i32
    %c0_i32_2 = arith.constant 0 : i32
    %5 = arith.cmpi slt, %1, %c0_i32_2 : i32
    %6 = arith.xori %4, %5 : i1
    %7 = arith.andi %6, %3 : i1
    %8 = arith.addi %2, %1 : i32
    %9 = arith.select %7, %8, %2 : i32
    %c0_i32_3 = arith.constant 0 : i32
    %c0_i32_4 = arith.constant 0 : i32
    %c0_i32_5 = arith.constant 0 : i32
    return %9, %c0_i32_3, %c0_i32_4 : i32, i32, i32
  }
  func.func @transform_2(%arg0: i32, %arg1: memref<16xi32, #tpu.memory_space<smem>>) -> (i32, i32, i32) {
    %c0_i32 = arith.constant 0 : i32
    %c0_i32_0 = arith.constant 0 : i32
    %c0_i32_1 = arith.constant 0 : i32
    return %arg0, %c0_i32, %c0_i32_0 : i32, i32, i32
  }
}

</mosaic_0001>

<llo_original>
// kernel: tpu_custom_call.1
$region0: #{tpu_custom_call.1}
  #allocation0 [shape = 'u32[]', space=smem, size = 0x4, offset = 0x4, fixed_abs, tag = 'smem constant byte address 0x4 - core index']
  #allocation1 [shape = 'u32[72,128]{1,0:T(1,128)}', space=vmem, size = 0x9000, scoped, tag = 'internal scratch']
  #allocation2 [shape = 's32[1]{0}', space=sflag, size = 0x4, scoped, tag = 'scoped memory for tpu_custom_call.1']
  #allocation3 [shape = 'u8[512]{0}', space=smem, size = 0x200, scoped, tag = 'prefetched SMEM operand 0']
  %s0 = inlined_call_operand.vmem [shape: s32[16], index: 0, kind: input, shape index: {}]
  %s1 = inlined_call_operand.vmem [shape: f32[50,1,32], index: 1, kind: input, shape index: {}]
  %s2 = inlined_call_operand.vmem [shape: f32[8,1,32], index: 2, kind: input, shape index: {}]
  %s3 = inlined_call_operand.hbm [shape: f32[16,1,32], index: 3, kind: output, shape index: {}]
  %s4 = sld [smem:[#allocation0]]
  $region41: #{tpu_custom_call.1} parent=0
    _
  %s6 = ssub.s32 1, %s4
  %s7 = scalar_select 0, %s6, %s4
  %s9 = sshll.u32 %s0, 4
  %s10 = int_to_ptr.vmem [resolvable:$true] %s9
  %12 = dma.vmem_to_smem %s10, 16, [#allocation3], [#allocation2]
  %14 = dma.done [#allocation2], 16
  %15 = sfence
  $region1: #{tpu_custom_call.1} parent=0
    #allocation4 [shape = 'u8[1024]{0}', space=vmem, size = 0x400, scoped, tag = 'output window, operand 0']
    #allocation5 [shape = 's32[2]{0}', space=sflag, size = 0x8, scoped, tag = 'scoped memory for tpu_custom_call.1']
    %16 = vsyncpa [#allocation5], 0
    %s17 = scalar_lea.sflag [#allocation5], 1
    %18 = vsyncpa %s17, 0
    loop: start=0, step=1, limit=18
    $region2: #{tpu_custom_call.1} parent=1 // loop_pre_header
      _
    $region3: #{tpu_custom_call.1} parent=1 // loop_header
      %s20 = sphi 0, %s24
      %p21 = scmp.ge.s32.totalorder %s20, 18
      %s32 = sphi 0, %s34
      %s35 = sphi 0, %s32
      %s36 = sphi 0, %s35
      %s52 = sphi 0, %s36
      %s82 = sphi 0, %s84
      %s85 = sphi 0, %s82
      %s86 = sphi 0, %s85
      %s102 = sphi 0, %s86
      %s108 = sphi 0, %s110
      %s111 = sphi 0, %s108
      %s112 = sphi 0, %s111
      %s128 = sphi 0, %s112
    $region4: #{tpu_custom_call.1} parent=1 // loop_header_branch
      %23 = sbr.rel (%p21) target = $region8
    $region5: #{tpu_custom_call.1} parent=1 // loop_body
      %s25 = ssub.s32 %s20, 1
      %s26 = ssub.s32 %s20, 2
      %s27 = sadd.s32 %s20, 1
      %s28 = sld [smem:[#allocation3 + %s20]]
      %s29 = sld [smem:[#allocation3 + %s27]]
      %s30 = ssub.s32 %s28, %s29
      %p31 = scmp.eq.s32.totalorder %s30, 0
      %s33 = sadd.s32 %s32, 1
      %s34 = scalar_select %p31, %s32, %s33
      %p37 = pneg %p31
      %p38 = scmp.eq.s32.totalorder %s20, 15
      %p39 = por %p37, %p38
      %p40 = scmp.ne.s32.totalorder %s32, %s35
      %p41 = scmp.eq.s32.totalorder %s20, 0
      %p42 = por %p40, %p41
      %p43 = scmp.ne.s32.totalorder %s32, %s35
      %p44 = scmp.eq.s32.totalorder %s25, 15
      %p45 = por %p43, %p44
      %p46 = scmp.ne.s32.totalorder %s35, %s36
      %p47 = scmp.eq.s32.totalorder %s25, 0
      %p48 = por %p46, %p47
      %p49 = scmp.ne.s32.totalorder %s35, %s36
      %p50 = scmp.eq.s32.totalorder %s26, 15
      %p51 = por %p49, %p50
      %p53 = scmp.ne.s32.totalorder %s36, %s52
      %p54 = scmp.eq.s32.totalorder %s26, 0
      %p55 = por %p53, %p54
      %p56 = scmp.lt.s32.totalorder %s20, 0
      %s57 = ssub.s32 0, %s20
      %s58 = scalar_select %p56, %s57, %s20
      %s59 = sand.u32 %s58, 7
      %s60 = ssub.s32 0, %s59
      %s61 = scalar_select %p56, %s60, %s59
      %p62 = scmp.ne.s32.totalorder %s61, 0
      %p63 = scmp.lt.s32.totalorder %s61, 0
      %p64 = pnand %p63, %p62
      %p65 = pneg %p64
      %s66 = sadd.s32 %s61, 8
      %s67 = scalar_select %p65, %s66, %s61
      %p68 = scmp.lt.s32.totalorder %s27, 0
      %s69 = ssub.s32 0, %s27
      %s70 = scalar_select %p68, %s69, %s27
      %s71 = sand.u32 %s70, 7
      %s72 = ssub.s32 0, %s71
      %s73 = scalar_select %p68, %s72, %s71
      %p74 = scmp.ne.s32.totalorder %s73, 0
      %p75 = scmp.lt.s32.totalorder %s73, 0
      %p76 = pnand %p75, %p74
      %p77 = pneg %p76
      %s78 = sadd.s32 %s73, 8
      %s79 = scalar_select %p77, %s78, %s73
      %s80 = ssub.s32 %s67, %s79
      %p81 = scmp.eq.s32.totalorder %s80, 0
      %s83 = sadd.s32 %s82, 1
      %s84 = scalar_select %p81, %s82, %s83
      %p87 = pneg %p81
      %p88 = scmp.eq.s32.totalorder %s20, 15
      %p89 = por %p87, %p88
      %p90 = scmp.ne.s32.totalorder %s82, %s85
      %p91 = scmp.eq.s32.totalorder %s20, 0
      %p92 = por %p90, %p91
      %p93 = scmp.ne.s32.totalorder %s82, %s85
      %p94 = scmp.eq.s32.totalorder %s25, 15
      %p95 = por %p93, %p94
      %p96 = scmp.ne.s32.totalorder %s85, %s86
      %p97 = scmp.eq.s32.totalorder %s25, 0
      %p98 = por %p96, %p97
      %p99 = scmp.ne.s32.totalorder %s85, %s86
      %p100 = scmp.eq.s32.totalorder %s26, 15
      %p101 = por %p99, %p100
      %p103 = scmp.ne.s32.totalorder %s86, %s102
      %p104 = scmp.eq.s32.totalorder %s26, 0
      %p105 = por %p103, %p104
      %s106 = ssub.s32 %s20, %s27
      %p107 = scmp.eq.s32.totalorder %s106, 0
      %s109 = sadd.s32 %s108, 1
      %s110 = scalar_select %p107, %s108, %s109
      %p113 = pneg %p107
      %p114 = scmp.eq.s32.totalorder %s20, 15
      %p115 = por %p113, %p114
      %p116 = scmp.ne.s32.totalorder %s108, %s111
      %p117 = scmp.eq.s32.totalorder %s20, 0
      %p118 = por %p116, %p117
      %p119 = scmp.ne.s32.totalorder %s108, %s111
      %p120 = scmp.eq.s32.totalorder %s25, 15
      %p121 = por %p119, %p120
      %p122 = scmp.ne.s32.totalorder %s111, %s112
      %p123 = scmp.eq.s32.totalorder %s25, 0
      %p124 = por %p122, %p123
      %p125 = scmp.ne.s32.totalorder %s111, %s112
      %p126 = scmp.eq.s32.totalorder %s26, 15
      %p127 = por %p125, %p126
      %p129 = scmp.ne.s32.totalorder %s112, %s128
      %p130 = scmp.eq.s32.totalorder %s26, 0
      %p131 = por %p129, %p130
      %p132 = scmp.le.s32.totalorder 1, %s20
      %p133 = scmp.lt.s32.totalorder %s20, 17
      %p134 = pnand %p132, %p133
      %p135 = pneg %p134
      // Predicated region
      $region9: #{tpu_custom_call.1} parent=5 // pred_check
        _
      $region10: #{tpu_custom_call.1} parent=5 // pred_check_branch
        %137 = sbr.rel (%p134) target = $region12
      $region11: #{tpu_custom_call.1} parent=5 // pred_region
        %s138 = ssub.s32 %s20, 1
      $region12: #{tpu_custom_call.1} parent=5 // pred_fallthru
        _
      %p139 = scmp.lt.s32.totalorder %s20, 16
      // Predicated region
      $region13: #{tpu_custom_call.1} parent=5 // pred_check
        %p140 = pneg %p139
      $region14: #{tpu_custom_call.1} parent=5 // pred_check_branch
        %142 = sbr.rel (%p140) target = $region16
      $region15: #{tpu_custom_call.1} parent=5 // pred_region
        // Predicated region
        $region17: #{tpu_custom_call.1} parent=15 // pred_check
          %p143 = pneg %p42
        $region18: #{tpu_custom_call.1} parent=15 // pred_check_branch
          %145 = sbr.rel (%p143) target = $region20
        $region19: #{tpu_custom_call.1} parent=15 // pred_region
          %s146 = sld [smem:[#allocation3 + %s20]]
          %p147 = scmp.lt.s32.totalorder %s146, 49
          %s148 = scalar_select %p147, %s146, 49
          %s149 = scalar_lea.vmem %s1, %s148
          %s150 = sld [smem:[#allocation3 + %s20]]
        $region20: #{tpu_custom_call.1} parent=15 // pred_fallthru
          _
        // Predicated region
        $region21: #{tpu_custom_call.1} parent=15 // pred_check
          %p151 = pneg %p92
        $region22: #{tpu_custom_call.1} parent=15 // pred_check_branch
          %153 = sbr.rel (%p151) target = $region24
        $region23: #{tpu_custom_call.1} parent=15 // pred_region
          %p154 = scmp.lt.s32.totalorder %s20, 0
          %s155 = ssub.s32 0, %s20
          %s156 = scalar_select %p154, %s155, %s20
          %s157 = sand.u32 %s156, 7
          %s158 = ssub.s32 0, %s157
          %s159 = scalar_select %p154, %s158, %s157
          %p160 = scmp.ne.s32.totalorder %s159, 0
          %p161 = scmp.lt.s32.totalorder %s159, 0
          %p162 = pnand %p161, %p160
          %p163 = pneg %p162
          %s164 = sadd.s32 %s159, 8
          %s165 = scalar_select %p163, %s164, %s159
          %p166 = scmp.lt.s32.totalorder %s165, 7
          %s167 = scalar_select %p166, %s165, 7
          %s168 = scalar_lea.vmem %s2, %s167
          %p169 = scmp.lt.s32.totalorder %s20, 0
          %s170 = ssub.s32 0, %s20
          %s171 = scalar_select %p169, %s170, %s20
          %s172 = sand.u32 %s171, 7
          %s173 = ssub.s32 0, %s172
          %s174 = scalar_select %p169, %s173, %s172
          %p175 = scmp.ne.s32.totalorder %s174, 0
          %p176 = scmp.lt.s32.totalorder %s174, 0
          %p177 = pnand %p176, %p175
          %p178 = pneg %p177
          %s179 = sadd.s32 %s174, 8
          %s180 = scalar_select %p178, %s179, %s174
        $region24: #{tpu_custom_call.1} parent=15 // pred_fallthru
          _
      $region16: #{tpu_custom_call.1} parent=5 // pred_fallthru
        _
      %p181 = scmp.le.s32.totalorder 1, %s20
      %p182 = scmp.lt.s32.totalorder %s20, 17
      %p183 = pnand %p181, %p182
      %p184 = pneg %p183
      // Predicated region
      $region25: #{tpu_custom_call.1} parent=5 // pred_check
        _
      $region26: #{tpu_custom_call.1} parent=5 // pred_check_branch
        %186 = sbr.rel (%p183) target = $region28
      $region27: #{tpu_custom_call.1} parent=5 // pred_region
        %s187 = ssub.s32 %s20, 1
        %s188 = sld [smem:[#allocation3 + %s25]]
        %p189 = scmp.lt.s32.totalorder %s188, 49
        %s190 = scalar_select %p189, %s188, 49
        %s191 = scalar_lea.vmem %s1, %s190
        %p192 = pneg %p48
        %p193 = pneg %p45
        %p194 = scmp.lt.s32.totalorder %s25, 0
        %s195 = ssub.s32 0, %s25
        %s196 = scalar_select %p194, %s195, %s25
        %s197 = sand.u32 %s196, 7
        %s198 = ssub.s32 0, %s197
        %s199 = scalar_select %p194, %s198, %s197
        %p200 = scmp.ne.s32.totalorder %s199, 0
        %p201 = scmp.lt.s32.totalorder %s199, 0
        %p202 = pnand %p201, %p200
        %p203 = pneg %p202
        %s204 = sadd.s32 %s199, 8
        %s205 = scalar_select %p203, %s204, %s199
        %p206 = scmp.lt.s32.totalorder %s205, 7
        %s207 = scalar_select %p206, %s205, 7
        %s208 = scalar_lea.vmem %s2, %s207
        %p209 = pneg %p98
        %p210 = pneg %p95
        %p211 = pneg %p124
        %p212 = pneg %p121
        %s213 = sand.u32 %s111, 1
        %s214 = scalar_lea.sflag [#allocation5], %s213
        %s215 = sand.u32 %s111, 1
        %s216 = scalar_lea.vmem [#allocation4], %s215
        %s217 = sld [smem:[#allocation3 + %s25]]
        %p218 = scmp.lt.s32.totalorder %s217, 49
        %s219 = scalar_select %p218, %s217, 49
        %s220 = scalar_lea.vmem %s1, %s219
        %s221 = sld [smem:[#allocation3 + %s25]]
        %p222 = scmp.lt.s32.totalorder %s25, 0
        %s223 = ssub.s32 0, %s25
        %s224 = scalar_select %p222, %s223, %s25
        %s225 = sand.u32 %s224, 7
        %s226 = ssub.s32 0, %s225
        %s227 = scalar_select %p222, %s226, %s225
        %p228 = scmp.ne.s32.totalorder %s227, 0
        %p229 = scmp.lt.s32.totalorder %s227, 0
        %p230 = pnand %p229, %p228
        %p231 = pneg %p230
        %s232 = sadd.s32 %s227, 8
        %s233 = scalar_select %p231, %s232, %s227
        %p234 = scmp.lt.s32.totalorder %s233, 7
        %s235 = scalar_select %p234, %s233, 7
        %s236 = scalar_lea.vmem %s2, %s235
        %p237 = scmp.lt.s32.totalorder %s25, 0
        %s238 = ssub.s32 0, %s25
        %s239 = scalar_select %p237, %s238, %s25
        %s240 = sand.u32 %s239, 7
        %s241 = ssub.s32 0, %s240
        %s242 = scalar_select %p237, %s241, %s240
        %p243 = scmp.ne.s32.totalorder %s242, 0
        %p244 = scmp.lt.s32.totalorder %s242, 0
        %p245 = pnand %p244, %p243
        %p246 = pneg %p245
        %s247 = sadd.s32 %s242, 8
        %s248 = scalar_select %p246, %s247, %s242
        %v249 = vld [vmem:[%s220] sm:$0x1]
        %v250 = vld [vmem:[%s236] sm:$0x1]
        %v251 = vadd.f32 %v249, %v250
        %vm252 = vcmask 253952
        %253 = vst.msk [vmem:[%s216] sm:$0x1] %vm252, %v251
        %s254 = sand.u32 %s111, 1
        %s255 = scalar_lea.sflag [#allocation5], %s254
        %s256 = sand.u32 %s111, 1
        %s257 = scalar_lea.vmem [#allocation4], %s256
        // Predicated region
        $region29: #{tpu_custom_call.1} parent=27 // pred_check
          %p258 = pneg %p121
        $region30: #{tpu_custom_call.1} parent=27 // pred_check_branch
          %260 = sbr.rel (%p258) target = $region32
        $region31: #{tpu_custom_call.1} parent=27 // pred_region
          %262 = vsyncadd %s255, 0
          %s263 = scalar_lea.hbm %s3, %s25
          %s265 = sshll.u32 %s257, 4
          %s266 = int_to_ptr.vmem [resolvable:$true] %s265
          %s267 = sshll.u32 %s263, 4
          %s268 = int_to_ptr.hbm [resolvable:$true] %s267
          %270 = dma.vmem_to_hbm [thread:$0]  %s266, 16, %s268, %s255
        $region32: #{tpu_custom_call.1} parent=27 // pred_fallthru
          _
      $region28: #{tpu_custom_call.1} parent=5 // pred_fallthru
        _
      %p271 = scmp.le.s32.totalorder 2, %s20
      // Predicated region
      $region33: #{tpu_custom_call.1} parent=5 // pred_check
        %p272 = pneg %p271
      $region34: #{tpu_custom_call.1} parent=5 // pred_check_branch
        %274 = sbr.rel (%p272) target = $region36
      $region35: #{tpu_custom_call.1} parent=5 // pred_region
        %s275 = ssub.s32 %s20, 2
        // Predicated region
        $region37: #{tpu_custom_call.1} parent=35 // pred_check
          %p276 = pneg %p127
        $region38: #{tpu_custom_call.1} parent=35 // pred_check_branch
          %278 = sbr.rel (%p276) target = $region40
        $region39: #{tpu_custom_call.1} parent=35 // pred_region
          %s279 = sand.u32 %s112, 1
          %s280 = scalar_lea.sflag [#allocation5], %s279
          %s281 = sand.u32 %s112, 1
          %s282 = scalar_lea.vmem [#allocation4], %s281
          %284 = dma.done %s280, 16
        $region40: #{tpu_custom_call.1} parent=35 // pred_fallthru
          _
      $region36: #{tpu_custom_call.1} parent=5 // pred_fallthru
        _
    $region6: #{tpu_custom_call.1} parent=1 // loop_footer
      %s24 = sadd.s32 1, %s20
    $region7: #{tpu_custom_call.1} parent=1 // loop_footer_branch
      %19 = sbr.rel target = $region3
    $region8: #{tpu_custom_call.1} parent=1 // loop_exit
      _
    %285 = vsyncpa [#allocation5], 1
    %s286 = scalar_lea.sflag [#allocation5], 1
    %287 = vsyncpa %s286, 1

</llo_original>
